<compile_context>
chip_gen: v5e
topology: v5e:2x2
jax: 0.10.0
libtpu: 0.0.40
codegen_flags: <defaults>
</compile_context>

<pallas_src>
import jax
import jax.numpy as jnp
from jax.experimental import pallas as pl
from jax.experimental.pallas import tpu as pltpu


def _round_up(x, m):
    return -(-x // m) * m


def _round_down(x, m):
    return (x // m) * m


def _tpu_config():
    """Return (generation, multi_tensorcore, tile_bytes, vmem_limit_bytes)."""
    kind = ""
    try:
        dev = jax.devices()[0]
        if dev.platform == "tpu":
            kind = dev.device_kind.lower()
    except Exception:
        pass
    if "v7" in kind or "7x" in kind:
        # 2 TCs/chip, 64 MiB physical VMEM: 8 MiB tiles, 48 MiB scoped limit.
        return 7, True, 8 * 1024 * 1024, 48 * 1024 * 1024
    if "v6" in kind:
        # 1 TC, 128 MiB VMEM: free headroom for 8 MiB tiles.
        return 6, False, 8 * 1024 * 1024, 64 * 1024 * 1024
    if "v5p" in kind or "v4" in kind:
        # Older megacore chips (2 TCs): keep modest tiles, enable the split.
        return 5, True, 4 * 1024 * 1024, 32 * 1024 * 1024
    if "v5" in kind:
        return 5, False, 4 * 1024 * 1024, 32 * 1024 * 1024
    return None, False, 4 * 1024 * 1024, 32 * 1024 * 1024


def _choose_blocks(R, L, itemsize, tile_bytes, multi_tc):
    """Pick (row_block, lane_block) for an (R, L) elementwise problem."""
    # Native sublane multiple for this dtype: 8 f32, 16 bf16, 32 int8/fp8.
    sub = max(8, 32 // itemsize)

    # ---- lane (last dim) block ----
    max_lane = max(128, tile_bytes // (sub * itemsize))
    if L <= max_lane:
        l_blk = L  # full dim -> always a legal (and unmasked) block
    else:
        # Largest 128-multiple DIVISOR of L that fits the budget: no ragged
        # trailing lane block -> every store stays unmasked.
        l_blk = 0
        for k in range(max_lane // 128, 0, -1):
            cand = k * 128
            if L % cand == 0:
                l_blk = cand
                break
        if l_blk == 0:
            l_blk = max(128, _round_down(max_lane, 128))

    # ---- row (sublane) block ----
    rows_fit = max(sub, _round_down(tile_bytes // (l_blk * itemsize), sub))
    if R <= sub:
        r_blk = R  # equals full dim -> allowed even if < sub
    elif not multi_tc:
        # Single TensorCore: fewest, biggest tiles (no forced split).
        r_blk = R if R <= rows_fit else rows_fit
    else:
        # >=2 balanced row blocks so both TensorCores get work; blocks are
        # sublane-multiple sized and the trailing block is never the big one
        # (e.g. R=17 -> 8,8,1 rather than 16,1).
        r_blk = min(rows_fit, max(sub, _round_down(R // 2, sub)))

    # Multi-TC with a single (row, lane) block: split the lane axis instead so
    # both cores still get work (e.g. N=1, C=3 images).
    if multi_tc and r_blk >= R and l_blk >= L and L >= 256:
        l_blk = max(128, _round_down(L // 2, 128))

    return r_blk, l_blk


def _normalize_kernel(scale_ref, bias_ref, x_ref, o_ref):
    # scale/bias: (r_blk, 1); x/o: (r_blk, l_blk).  Single fused multiply-add
    # on the VPU in the scale/bias compute dtype (f32, or bf16 on v6e/v7x).
    x = x_ref[...].astype(scale_ref.dtype)
    o_ref[...] = (x * scale_ref[...] + bias_ref[...]).astype(o_ref.dtype)


def normalize(x, mean, std):
    """(x - mean[None, :, None, None]) / std[None, :, None, None] for NCHW x."""
    N, C, H, W = x.shape
    R, L = N * C, H * W
    x2 = x.reshape(R, L)  # free: NCHW is contiguous per (n, c) slab

    gen, multi_tc, tile_bytes, vmem_limit = _tpu_config()

    # Fold (x - mean) / std into one FMA: y = x * (1/std) + (-mean/std).
    mean32 = mean.astype(jnp.float32)
    std32 = std.astype(jnp.float32)
    scale = jnp.tile(1.0 / std32, (N,)).reshape(R, 1)      # (N*C, 1)
    bias = jnp.tile(-mean32 / std32, (N,)).reshape(R, 1)   # (N*C, 1)

    # bf16 inputs on chips with a bf16 VALU (v6e/v7x): compute in bf16.
    if x.dtype == jnp.bfloat16 and gen is not None and gen >= 6:
        scale = scale.astype(jnp.bfloat16)
        bias = bias.astype(jnp.bfloat16)

    r_blk, l_blk = _choose_blocks(R, L, x.dtype.itemsize, tile_bytes, multi_tc)
    grid = (pl.cdiv(R, r_blk), pl.cdiv(L, l_blk))

    cost = pl.CostEstimate(
        flops=2 * R * L,
        bytes_accessed=2 * R * L * x.dtype.itemsize + 2 * R * scale.dtype.itemsize,
        transcendentals=0,
    )

    out2 = pl.pallas_call(
        _normalize_kernel,
        out_shape=jax.ShapeDtypeStruct((R, L), x.dtype),
        grid_spec=pl.GridSpec(
            grid=grid,
            in_specs=[
                pl.BlockSpec((r_blk, 1), lambda i, j: (i, 0)),       # scale
                pl.BlockSpec((r_blk, 1), lambda i, j: (i, 0)),       # bias
                pl.BlockSpec((r_blk, l_blk), lambda i, j: (i, j)),   # x
            ],
            out_specs=pl.BlockSpec((r_blk, l_blk), lambda i, j: (i, j)),
        ),
        compiler_params=pltpu.CompilerParams(
            dimension_semantics=("parallel", "parallel"),
            vmem_limit_bytes=vmem_limit,
        ),
        cost_estimate=cost,
    )(scale, bias, x2)
    return out2.reshape(N, C, H, W)


if __name__ == "__main__":
    key = jax.random.PRNGKey(0)
    N, C, H, W = 2, 4, 16, 16

    # Deterministic "dataset" statistics (module __init__ takes mean, std lists).
    mean = jnp.array([0.4914, 0.4822, 0.4465, 0.5000], dtype=jnp.float32)
    std = jnp.array([0.2471, 0.2435, 0.2616, 0.2500], dtype=jnp.float32)

    x = jax.random.uniform(key, (N, C, H, W), dtype=jnp.float32)

    out = jax.block_until_ready(normalize(x, mean, std))

    # Reference check in plain JAX (same semantics as the PyTorch forward).
    ref = (x - mean[None, :, None, None]) / std[None, :, None, None]
    assert out.shape == (N, C, H, W)
    assert jnp.allclose(out, ref, atol=1e-5, rtol=1e-5)

    print("KERNEL_OK")
</pallas_src>

<mosaic_0001>
module attributes {stable_mosaic.version = 11 : i64} {
  func.func @_normalize_kernel(%arg0: i32, %arg1: i32, %arg2: memref<8x1xf32, #tpu.memory_space<vmem>>, %arg3: memref<8x1xf32, #tpu.memory_space<vmem>>, %arg4: memref<8x256xf32, #tpu.memory_space<vmem>>, %arg5: memref<8x256xf32, #tpu.memory_space<vmem>>) attributes {dimension_semantics = [#tpu.dimension_semantics<parallel>, #tpu.dimension_semantics<parallel>], iteration_bounds = array<i64: 1, 1>, scalar_prefetch = 0 : i64, scratch_operands = 0 : i64, tpu.core_type = #tpu.core_type<tc>, window_params = [{transform_indices = @transform_0, window_bounds = array<i64: 8, 1>}, {transform_indices = @transform_1, window_bounds = array<i64: 8, 1>}, {transform_indices = @transform_2, window_bounds = array<i64: 8, 256>}, {transform_indices = @transform_3, window_bounds = array<i64: 8, 256>}]} {
    %c0 = arith.constant 0 : index
    %c0_0 = arith.constant 0 : index
    %0 = vector.load %arg4[%c0, %c0_0] : memref<8x256xf32, #tpu.memory_space<vmem>>, vector<8x256xf32>
    %c0_1 = arith.constant 0 : index
    %c0_2 = arith.constant 0 : index
    %1 = vector.load %arg2[%c0_1, %c0_2] : memref<8x1xf32, #tpu.memory_space<vmem>>, vector<8x1xf32>
    %2 = vector.broadcast %1 : vector<8x1xf32> to vector<8x256xf32>
    %3 = arith.mulf %0, %2 : vector<8x256xf32>
    %c0_3 = arith.constant 0 : index
    %c0_4 = arith.constant 0 : index
    %4 = vector.load %arg3[%c0_3, %c0_4] : memref<8x1xf32, #tpu.memory_space<vmem>>, vector<8x1xf32>
    %5 = vector.broadcast %4 : vector<8x1xf32> to vector<8x256xf32>
    %6 = arith.addf %3, %5 : vector<8x256xf32>
    %c0_5 = arith.constant 0 : index
    %c0_6 = arith.constant 0 : index
    %7 = vector.load %arg5[%c0_5, %c0_6] : memref<8x256xf32, #tpu.memory_space<vmem>>, vector<8x256xf32>
    tpu.vector_store %arg5[%c0_5, %c0_6], %6 {strides = array<i32>} : memref<8x256xf32, #tpu.memory_space<vmem>>, vector<8x256xf32>,
    return
  }
  func.func @transform_0(%arg0: i32, %arg1: i32) -> (i32, i32) {
    %c0_i32 = arith.constant 0 : i32
    %c0_i32_0 = arith.constant 0 : i32
    return %arg0, %c0_i32 : i32, i32
  }
  func.func @transform_1(%arg0: i32, %arg1: i32) -> (i32, i32) {
    %c0_i32 = arith.constant 0 : i32
    %c0_i32_0 = arith.constant 0 : i32
    return %arg0, %c0_i32 : i32, i32
  }
  func.func @transform_2(%arg0: i32, %arg1: i32) -> (i32, i32) {
    %c0_i32 = arith.constant 0 : i32
    return %arg0, %arg1 : i32, i32
  }
  func.func @transform_3(%arg0: i32, %arg1: i32) -> (i32, i32) {
    %c0_i32 = arith.constant 0 : i32
    return %arg0, %arg1 : i32, i32
  }
}

</mosaic_0001>

<llo_original>
// kernel: tpu_custom_call.1
$region0: #{tpu_custom_call.1}
  #allocation0 [shape = 'u32[]', space=smem, size = 0x4, offset = 0x4, fixed_abs, tag = 'smem constant byte address 0x4 - core index']
  #allocation1 [shape = 'u32[72,128]{1,0:T(1,128)}', space=vmem, size = 0x9000, scoped, tag = 'internal scratch']
  %s0 = inlined_call_operand.vmem [shape: f32[8,1], index: 0, kind: input, shape index: {}]
  %s1 = inlined_call_operand.vmem [shape: f32[8,1], index: 1, kind: input, shape index: {}]
  %s2 = inlined_call_operand.vmem [shape: f32[8,256], index: 2, kind: input, shape index: {}]
  %s3 = inlined_call_operand.hbm [shape: f32[8,256], index: 3, kind: output, shape index: {}]
  %s4 = sld [smem:[#allocation0]]
  $region22: #{tpu_custom_call.1} parent=0
    _
  %s6 = ssub.s32 1, %s4
  %s7 = scalar_select 0, %s6, %s4
  $region1: #{tpu_custom_call.1} parent=0
    #allocation2 [shape = 'u8[8192]{0}', space=vmem, size = 0x2000, scoped, tag = 'output window, operand 0, single buffered']
    #allocation3 [shape = 's32[1]{0}', space=sflag, size = 0x4, scoped, tag = 'scoped memory for tpu_custom_call.1']
    %8 = vsyncpa [#allocation3], 0
    // Predicated region
    $region2: #{tpu_custom_call.1} parent=1 // pred_check
      _
    $region3: #{tpu_custom_call.1} parent=1 // pred_check_branch
      %10 = sbr.rel (0) target = $region5
    $region4: #{tpu_custom_call.1} parent=1 // pred_region
      _
    $region5: #{tpu_custom_call.1} parent=1 // pred_fallthru
      _
    // Predicated region
    $region6: #{tpu_custom_call.1} parent=1 // pred_check
      _
    $region7: #{tpu_custom_call.1} parent=1 // pred_check_branch
      %12 = sbr.rel (0) target = $region9
    $region8: #{tpu_custom_call.1} parent=1 // pred_region
      _
    $region9: #{tpu_custom_call.1} parent=1 // pred_fallthru
      _
    // Predicated region
    $region10: #{tpu_custom_call.1} parent=1 // pred_check
      _
    $region11: #{tpu_custom_call.1} parent=1 // pred_check_branch
      %14 = sbr.rel (0) target = $region13
    $region12: #{tpu_custom_call.1} parent=1 // pred_region
      _
    $region13: #{tpu_custom_call.1} parent=1 // pred_fallthru
      _
    %v15 = vld [vmem:[%s2] sm:$0xff]
    %v16 = vld [vmem:[%s2 + $0x8] sm:$0xff]
    %v17 = vld [vmem:[%s0] sm:$0xff]
    %19 = vset.pattern.permute.xlu0 0
    %20 = vperm.xlu0 %19, %v17
    %v21 = vpop.permute.xlu0 %20
    %v23 = vmul.f32 %v15, %v21
    %v24 = vmul.f32 %v16, %v21
    %v25 = vld [vmem:[%s1] sm:$0xff]
    %27 = vset.pattern.permute.xlu0 0
    %28 = vperm.xlu0 %27, %v25
    %v29 = vpop.permute.xlu0 %28
    %v31 = vadd.f32 %v23, %v29
    %v32 = vadd.f32 %v24, %v29
    %33 = vst [vmem:[#allocation2] sm:$0xff] %v31
    %34 = vst [vmem:[#allocation2 + $0x8] sm:$0xff] %v32
    // Predicated region
    $region14: #{tpu_custom_call.1} parent=1 // pred_check
      _
    $region15: #{tpu_custom_call.1} parent=1 // pred_check_branch
      %36 = sbr.rel (0) target = $region17
    $region16: #{tpu_custom_call.1} parent=1 // pred_region
      %38 = vsyncadd [#allocation3], 0
      %s40 = sshll.u32 [#allocation2], 4
      %s41 = int_to_ptr.vmem [resolvable:$true] %s40
      %s42 = sshll.u32 %s3, 4
      %s43 = int_to_ptr.hbm [resolvable:$true] %s42
      %45 = dma.vmem_to_hbm [thread:$0]  %s41, 256, %s43, [#allocation3]
    $region17: #{tpu_custom_call.1} parent=1 // pred_fallthru
      _
    // Predicated region
    $region18: #{tpu_custom_call.1} parent=1 // pred_check
      _
    $region19: #{tpu_custom_call.1} parent=1 // pred_check_branch
      %47 = sbr.rel (0) target = $region21
    $region20: #{tpu_custom_call.1} parent=1 // pred_region
      %49 = dma.done [#allocation3], 256
    $region21: #{tpu_custom_call.1} parent=1 // pred_fallthru
      _
    %50 = vsyncpa [#allocation3], 1

</llo_original>
